<compile_context>
chip_gen: v5e
topology: v5e:2x2
jax: 0.10.0
libtpu: 0.0.40
codegen_flags: <defaults>
</compile_context>

<pallas_src>
import jax
import jax.numpy as jnp
import numpy as np
from jax.experimental import pallas as pl
from jax.experimental.pallas import tpu as pltpu

LN_EPS = 1e-5
_ROW_ALIGN = 16  # bf16-native sublane tile -> keeps bf16 u_ext blocks layout-legal


def _round_up(x, m):
    return ((x + m - 1) // m) * m


# ----------------------------- Pallas kernels -----------------------------

def pass1_kernel(x_ref, pg_ref, ubias_ref, u_ref):
    """u_ext = ((x - mu) * rsqrt(var)) @ Pg + u_bias for one (TILE_M, D) tile.

    Pg already carries LayerNorm gamma, the shared P projection and the 1/D
    feat column; u_bias carries beta @ Pext plus the constant-1 bias lane used
    by pass 2.  LN stats are computed in a single pass (E[x], E[x^2])."""
    x = x_ref[...].astype(jnp.float32)
    mu = jnp.mean(x, axis=-1, keepdims=True)
    ex2 = jnp.mean(x * x, axis=-1, keepdims=True)
    var = jnp.maximum(ex2 - mu * mu, 0.0)
    xhat = (x - mu) * jax.lax.rsqrt(var + LN_EPS)
    u = jnp.dot(xhat, pg_ref[...], preferred_element_type=jnp.float32)
    u_ref[...] = (u + ubias_ref[...]).astype(u_ref.dtype)


def pass2_kernel(u_ref, w_ref, out_ref):
    """out = u_ext @ W_full (DLT/Toeplitz/Q/gate/scale/bias all folded in W)."""
    out_ref[...] = jnp.dot(
        u_ref[...], w_ref[...], preferred_element_type=jnp.float32
    ).astype(out_ref.dtype)


# ------------------------------ glue helpers ------------------------------

def phi_logic(L, r):
    # TODO(synk): phi_logic is not defined in the provided source; deterministic
    # sinusoidal stand-in producing the same (L, r) shaped phi_det.
    t = jnp.arange(L, dtype=jnp.float32)[:, None]
    k = jnp.arange(r, dtype=jnp.float32)[None, :]
    return jnp.cos(jnp.pi * (2.0 * t + 1.0) * (k + 1.0) / (2.0 * L))


def make_dlt_matrix(r):
    # TODO(synk): DLT is not defined in the provided source; use an orthonormal
    # DCT-II matrix as the deterministic (r, r) spectral transform: z = u @ C.T
    i = jnp.arange(r, dtype=jnp.float32)[None, :]
    j = jnp.arange(r, dtype=jnp.float32)[:, None]
    C = jnp.sqrt(2.0 / r) * jnp.cos(jnp.pi * (i + 0.5) * j / r)
    C = C.at[0, :].multiply(1.0 / jnp.sqrt(2.0))
    return C


def make_toeplitz_matrix(kernel, r):
    # z @ M  ==  F.conv1d(z[..., None, :], kernel, padding='same')  (odd k, zero pad)
    k = kernel.shape[0]
    pad = k // 2
    idx = jnp.arange(r)
    diff = idx[:, None] - idx[None, :] + pad                  # (in, out)
    return jnp.where((diff >= 0) & (diff < k),
                     kernel[jnp.clip(diff, 0, k - 1)], 0.0).astype(jnp.float32)


# -------------------- generation-aware tiling / budgets --------------------

def _tpu_vmem_capacity_bytes():
    try:
        info = pltpu.get_tpu_info()
        for attr in ("vmem_capacity_bytes", "vmem_bytes", "vmem_size_bytes"):
            v = getattr(info, attr, None)
            if v:
                return int(v)
    except Exception:
        pass
    return 64 * 1024 * 1024  # conservative default: assume v7x-sized VMEM


def _budgets():
    vmem = _tpu_vmem_capacity_bytes()
    if vmem >= 100 * 1024 * 1024:
        # v5e / v6e: 128 MiB physical VMEM -> big tiles, high scoped limit.
        return 96 * 1024 * 1024, 12 * 1024 * 1024
    # v7x: 64 MiB physical VMEM -> stay inside the 32 MiB scoped limit.
    return 32 * 1024 * 1024, 5 * 1024 * 1024


def _pick_tile_m(M, D, block_budget):
    """Largest 16-aligned row tile within the per-block VMEM budget, capped so
    the grid has >= 2 steps whenever M allows (v7x dual-TC + double buffering).
    M is later padded up to a tile multiple, so no exact-divisor fallback."""
    bytes_per_row = max(D, 128) * 4
    t = max(_ROW_ALIGN, (block_budget // bytes_per_row) // _ROW_ALIGN * _ROW_ALIGN)
    if M > _ROW_ALIGN:
        half = _round_up((M + 1) // 2, _ROW_ALIGN)   # ensure >= 2 grid steps
        t = min(t, half)
    t = min(t, _round_up(M, _ROW_ALIGN))
    return t


# ------------------------------- forward ----------------------------------

def sia_forward(x, params, step):
    B, L, D = x.shape
    r = params["P_w"].shape[0]
    M = B * L

    vmem_limit, block_budget = _budgets()
    tile_m = _pick_tile_m(M, D, block_budget)
    M_pad = _round_up(M, tile_m)
    grid = (M_pad // tile_m,)

    cparams = pltpu.CompilerParams(
        dimension_semantics=("parallel",),
        vmem_limit_bytes=vmem_limit,
    )

    x2d = x.reshape(M, D)
    if M_pad != M:
        x2d = jnp.pad(x2d, ((0, M_pad - M), (0, 0)))

    # ---- host-side folding for pass 1 (lane-dense 128-wide projection) ----
    r_pad = _round_up(r + 2, 128)
    FEAT, ONE = r, r + 1
    gamma = params["ln_gamma"].astype(jnp.float32)
    beta = params["ln_beta"].astype(jnp.float32)
    p_base = jnp.zeros((D, r_pad), jnp.float32)
    p_base = p_base.at[:, :r].set(params["P_w"].T.astype(jnp.float32))
    p_base = p_base.at[:, FEAT].set(1.0 / D)                  # feat = mean_d(LN(x))
    pg = gamma[:, None] * p_base                              # gamma folded in
    u_bias = (beta @ p_base)[None, :]                         # beta folded in
    u_bias = u_bias.at[0, ONE].set(1.0)                       # constant-1 bias lane

    # ---- pass 1: x read from HBM exactly once, lane-dense bf16 u_ext ------
    u_ext = pl.pallas_call(
        pass1_kernel,
        out_shape=jax.ShapeDtypeStruct((M_pad, r_pad), jnp.bfloat16),
        grid_spec=pltpu.PrefetchScalarGridSpec(
            num_scalar_prefetch=0,
            grid=grid,
            in_specs=[
                pl.BlockSpec((tile_m, D), lambda i: (i, 0)),      # x rows
                pl.BlockSpec((D, r_pad), lambda i: (0, 0)),       # gamma*[P^T|1/D|0]
                pl.BlockSpec((1, r_pad), lambda i: (0, 0)),       # beta@Pext + 1-lane
            ],
            out_specs=pl.BlockSpec((tile_m, r_pad), lambda i: (i, 0)),
        ),
        compiler_params=cparams,
    )(x2d, pg, u_bias)

    # ---- tiny (L, r) phi/scale glue (couples all batches; torch semantics) ----
    feat = u_ext[:M, FEAT].astype(jnp.float32).reshape(B, L)  # mean_d(LN(x))
    mean_feat = jnp.mean(feat, axis=0)                        # (L,)
    phi_det = phi_logic(L, r)                                 # (L, r)
    det_scale = jnp.minimum(jnp.asarray(step, jnp.float32) / 2000.0, 1.0)
    phi_data = mean_feat[:, None] * params["phi_W"][None, :, 0]
    phi = det_scale * phi_det + params["phi_bias"] + phi_data
    # TODO(synk): last_phi_entropy / prev_phi bookkeeping has no effect on the
    # forward output and is not reproduced here.
    scale = jnp.sum(phi, axis=1) / float(r)                   # (L,)
    if scale.shape[0] != D:
        assert D % scale.shape[0] == 0, "repeat_interleave requires D % L == 0"
        scale = jnp.repeat(scale, D // scale.shape[0])
    scale = scale.reshape(1, D).astype(jnp.float32)

    g = jax.nn.sigmoid(params["g_logit"].astype(jnp.float32))
    if g.shape[0] != D:
        assert D % g.shape[0] == 0, "repeat_interleave requires D % len(g) == 0"
        g = jnp.repeat(g, D // g.shape[0])
    gs = g.reshape(1, D) * scale                              # (1, D)

    # ---- fold DLT / Toeplitz / Q / gate / scale / bias into one (r_pad, D) ----
    hp = jax.lax.Precision.HIGHEST
    dlt_t = make_dlt_matrix(r).T                              # (r, r)
    toep_m = make_toeplitz_matrix(params["toep"], r)          # (r, r)
    q_eff = params["Q_w"].T.astype(jnp.float32) * gs          # (r, D)
    w_chain = jnp.dot(jnp.dot(dlt_t, toep_m, precision=hp), q_eff, precision=hp)
    w_full = jnp.zeros((r_pad, D), jnp.float32)
    w_full = w_full.at[:r, :].set(w_chain)                    # spectral chain
    w_full = w_full.at[ONE, :].set(params["Q_b"].astype(jnp.float32) * gs[0])
    w_full = w_full.astype(jnp.bfloat16)                      # FEAT + pad rows stay 0

    # ---- pass 2: out = u_ext @ W_full (single matmul, bias via the 1-lane) ----
    out2d = pl.pallas_call(
        pass2_kernel,
        out_shape=jax.ShapeDtypeStruct((M_pad, D), x.dtype),
        grid_spec=pltpu.PrefetchScalarGridSpec(
            num_scalar_prefetch=0,
            grid=grid,
            in_specs=[
                pl.BlockSpec((tile_m, r_pad), lambda i: (i, 0)),  # u_ext rows
                pl.BlockSpec((r_pad, D), lambda i: (0, 0)),       # W_full
            ],
            out_specs=pl.BlockSpec((tile_m, D), lambda i: (i, 0)),
        ),
        compiler_params=cparams,
    )(u_ext, w_full)

    return out2d[:M].reshape(B, L, D)


# ------------------------------ JAX reference ------------------------------

def _layernorm(x, gamma, beta):
    mu = jnp.mean(x, axis=-1, keepdims=True)
    var = jnp.mean(jnp.square(x - mu), axis=-1, keepdims=True)
    return (x - mu) * jax.lax.rsqrt(var + LN_EPS) * gamma + beta


def sia_reference(x, params, step):
    B, L, D = x.shape
    r = params["P_w"].shape[0]
    xn = _layernorm(x, params["ln_gamma"], params["ln_beta"])
    phi_det = phi_logic(L, r)
    det_scale = step / 2000.0 if step < 2000 else 1.0
    feat = jnp.mean(xn, axis=-1, keepdims=True)                      # (B, L, 1)
    phi_data = jnp.mean(feat * params["phi_W"][:, 0], axis=0)        # (L, r)
    phi = det_scale * phi_det + params["phi_bias"] + phi_data
    scale = jnp.sum(phi, axis=1) / float(r)
    u = jnp.einsum("bld,rd->blr", xn, params["P_w"],
                   precision=jax.lax.Precision.HIGHEST)
    C = make_dlt_matrix(r)
    z = jnp.einsum("blr,sr->bls", u, C, precision=jax.lax.Precision.HIGHEST)
    kker = params["toep"]
    k = kker.shape[0]
    pad = k // 2
    zp = jnp.pad(z, ((0, 0), (0, 0), (pad, pad)))                    # 'same' cross-correlation
    zm = sum(kker[j] * zp[..., j:j + r] for j in range(k))
    y = jnp.einsum("blr,dr->bld", zm, params["Q_w"],
                   precision=jax.lax.Precision.HIGHEST) + params["Q_b"]
    g = jax.nn.sigmoid(params["g_logit"])
    if g.shape[0] != D:
        g = jnp.repeat(g, D // g.shape[0])
    if scale.shape[0] != D:
        scale = jnp.repeat(scale, D // scale.shape[0])
    return g.reshape(1, 1, D) * y * scale.reshape(1, 1, D)


if __name__ == "__main__":
    B, L, D, r = 2, 8, 32, 8
    step = 500
    k_len = r if r % 2 == 1 else (r - 1 if r > 1 else 1)

    key = jax.random.PRNGKey(0)
    ks = jax.random.split(key, 8)
    params = {
        "g_logit": jnp.array([-1.0, 0.0], dtype=jnp.float32),          # as in __init__
        "ln_gamma": 1.0 + 0.1 * jax.random.normal(ks[0], (D,), jnp.float32),
        "ln_beta": 0.1 * jax.random.normal(ks[1], (D,), jnp.float32),
        "P_w": 0.2 * jax.random.normal(ks[2], (r, D), jnp.float32),     # SharedProj.P_shared
        "Q_w": 0.2 * jax.random.normal(ks[3], (D, r), jnp.float32),     # delta_Q.weight
        "Q_b": 0.1 * jax.random.normal(ks[4], (D,), jnp.float32),       # delta_Q.bias
        "phi_W": 0.5 * jax.random.normal(ks[5], (r, 1), jnp.float32),   # Linear(1, r, bias=False)
        "toep": jnp.ones((k_len,), jnp.float32) / float(k_len),         # toep_params init
        "phi_bias": jnp.zeros((L, r), jnp.float32),                     # lazily created param, zeros
    }
    x = jax.random.normal(ks[6], (B, L, D), jnp.float32)

    out = sia_forward(x, params, step)
    out = jax.block_until_ready(out)

    ref = sia_reference(x, params, step)
    np.testing.assert_allclose(np.asarray(out), np.asarray(ref), rtol=2e-2, atol=2e-2)
    print("KERNEL_OK")
</pallas_src>

<mosaic_0001>
module attributes {stable_mosaic.version = 11 : i64} {
  func.func @pass1_kernel(%arg0: i32, %arg1: memref<16x32xf32, #tpu.memory_space<vmem>>, %arg2: memref<32x128xf32, #tpu.memory_space<vmem>>, %arg3: memref<1x128xf32, #tpu.memory_space<vmem>>, %arg4: memref<16x128xbf16, #tpu.memory_space<vmem>>) attributes {dimension_semantics = [#tpu.dimension_semantics<parallel>], iteration_bounds = array<i64: 1>, scalar_prefetch = 0 : i64, scratch_operands = 0 : i64, tpu.core_type = #tpu.core_type<tc>, window_params = [{transform_indices = @transform_0, window_bounds = array<i64: 16, 32>}, {pipeline_mode = #tpu.pipeline_mode<synchronous>, transform_indices = @transform_1, window_bounds = array<i64: 32, 128>}, {pipeline_mode = #tpu.pipeline_mode<synchronous>, transform_indices = @transform_2, window_bounds = array<i64: 1, 128>}, {transform_indices = @transform_3, window_bounds = array<i64: 16, 128>}]} {
    %c0 = arith.constant 0 : index
    %c0_0 = arith.constant 0 : index
    %0 = vector.load %arg1[%c0, %c0_0] : memref<16x32xf32, #tpu.memory_space<vmem>>, vector<16x32xf32>
    %cst = arith.constant dense<0.000000e+00> : vector<16xf32>
    %1 = vector.multi_reduction <add>, %0, %cst [1] : vector<16x32xf32> to vector<16xf32>
    %2 = vector.shape_cast %1 : vector<16xf32> to vector<16x1xf32>
    %cst_1 = arith.constant 3.200000e+01 : f32
    %3 = vector.broadcast %cst_1 : f32 to vector<16x1xf32>
    %4 = arith.divf %2, %3 : vector<16x1xf32>
    %5 = arith.mulf %0, %0 : vector<16x32xf32>
    %cst_2 = arith.constant dense<0.000000e+00> : vector<16xf32>
    %6 = vector.multi_reduction <add>, %5, %cst_2 [1] : vector<16x32xf32> to vector<16xf32>
    %7 = vector.shape_cast %6 : vector<16xf32> to vector<16x1xf32>
    %cst_3 = arith.constant 3.200000e+01 : f32
    %8 = vector.broadcast %cst_3 : f32 to vector<16x1xf32>
    %9 = arith.divf %7, %8 : vector<16x1xf32>
    %10 = arith.mulf %4, %4 : vector<16x1xf32>
    %11 = arith.subf %9, %10 : vector<16x1xf32>
    %cst_4 = arith.constant 0.000000e+00 : f32
    %12 = vector.broadcast %cst_4 : f32 to vector<16x1xf32>
    %13 = arith.maximumf %11, %12 : vector<16x1xf32>
    %14 = vector.broadcast %4 : vector<16x1xf32> to vector<16x32xf32>
    %15 = arith.subf %0, %14 : vector<16x32xf32>
    %cst_5 = arith.constant 9.99999974E-6 : f32
    %16 = vector.broadcast %cst_5 : f32 to vector<16x1xf32>
    %17 = arith.addf %13, %16 : vector<16x1xf32>
    %18 = math.rsqrt %17 : vector<16x1xf32>
    %19 = vector.broadcast %18 : vector<16x1xf32> to vector<16x32xf32>
    %20 = arith.mulf %15, %19 : vector<16x32xf32>
    %c0_6 = arith.constant 0 : index
    %c0_7 = arith.constant 0 : index
    %21 = vector.load %arg2[%c0_6, %c0_7] : memref<32x128xf32, #tpu.memory_space<vmem>>, vector<32x128xf32>
    %cst_8 = arith.constant dense<0.000000e+00> : vector<16x128xf32>
    %22 = tpu.matmul %20, %21, %cst_8 {dimension_numbers = #tpu.dot_dimension_numbers<[1], [0], [0], [1], [0, 0, 1, 1], [], []>} : vector<16x32xf32>, vector<32x128xf32>, vector<16x128xf32> -> vector<16x128xf32>
    %c0_9 = arith.constant 0 : index
    %c0_10 = arith.constant 0 : index
    %23 = vector.load %arg3[%c0_9, %c0_10] : memref<1x128xf32, #tpu.memory_space<vmem>>, vector<1x128xf32>
    %24 = vector.broadcast %23 : vector<1x128xf32> to vector<16x128xf32>
    %25 = arith.addf %22, %24 : vector<16x128xf32>
    %26 = arith.truncf %25 : vector<16x128xf32> to vector<16x128xbf16>
    %c0_11 = arith.constant 0 : index
    %c0_12 = arith.constant 0 : index
    %27 = vector.load %arg4[%c0_11, %c0_12] : memref<16x128xbf16, #tpu.memory_space<vmem>>, vector<16x128xbf16>
    tpu.vector_store %arg4[%c0_11, %c0_12], %26 {strides = array<i32>} : memref<16x128xbf16, #tpu.memory_space<vmem>>, vector<16x128xbf16>,
    return
  }
  func.func @transform_0(%arg0: i32) -> (i32, i32) {
    %c0_i32 = arith.constant 0 : i32
    %c0_i32_0 = arith.constant 0 : i32
    return %arg0, %c0_i32 : i32, i32
  }
  func.func @transform_1(%arg0: i32) -> (i32, i32) {
    %c0_i32 = arith.constant 0 : i32
    %c0_i32_0 = arith.constant 0 : i32
    %c0_i32_1 = arith.constant 0 : i32
    return %c0_i32, %c0_i32_0 : i32, i32
  }
  func.func @transform_2(%arg0: i32) -> (i32, i32) {
    %c0_i32 = arith.constant 0 : i32
    %c0_i32_0 = arith.constant 0 : i32
    %c0_i32_1 = arith.constant 0 : i32
    return %c0_i32, %c0_i32_0 : i32, i32
  }
  func.func @transform_3(%arg0: i32) -> (i32, i32) {
    %c0_i32 = arith.constant 0 : i32
    %c0_i32_0 = arith.constant 0 : i32
    return %arg0, %c0_i32 : i32, i32
  }
}

</mosaic_0001>

<llo_original>
// kernel: tpu_custom_call.1
$region0: #{tpu_custom_call.1}
  #allocation0 [shape = 'u32[]', space=smem, size = 0x4, offset = 0x4, fixed_abs, tag = 'smem constant byte address 0x4 - core index']
  #allocation1 [shape = 'u32[72,128]{1,0:T(1,128)}', space=vmem, size = 0x9000, scoped, tag = 'internal scratch']
  %s0 = inlined_call_operand.hbm [shape: f32[16,32], index: 0, kind: input, shape index: {}]
  %s1 = inlined_call_operand.hbm [shape: f32[32,128], index: 1, kind: input, shape index: {}]
  %s2 = inlined_call_operand.vmem [shape: f32[1,128], index: 2, kind: input, shape index: {}]
  %s3 = inlined_call_operand.hbm [shape: bf16[16,128], index: 3, kind: output, shape index: {}]
  %s4 = sld [smem:[#allocation0]]
  $region30: #{tpu_custom_call.1} parent=0
    _
  %s6 = ssub.s32 1, %s4
  %s7 = scalar_select 0, %s6, %s4
  $region1: #{tpu_custom_call.1} parent=0
    #allocation2 [shape = 'u8[8192]{0}', space=vmem, size = 0x2000, scoped, tag = 'input window, operand 0, single buffered']
    #allocation3 [shape = 's32[1]{0}', space=sflag, size = 0x4, scoped, tag = 'scoped memory for tpu_custom_call.1']
    #allocation4 [shape = 's32[1]{0}', space=sflag, size = 0x4, scoped, tag = 'scoped memory for tpu_custom_call.1']
    #allocation5 [shape = 'u8[16384]{0}', space=vmem, size = 0x4000, scoped, tag = 'input window, operand 1, single buffered']
    #allocation6 [shape = 's32[1]{0}', space=sflag, size = 0x4, scoped, tag = 'scoped memory for tpu_custom_call.1']
    #allocation7 [shape = 'u8[4096]{0}', space=vmem, size = 0x1000, scoped, tag = 'output window, operand 0, single buffered']
    %8 = vsyncpa [#allocation3], 0
    %9 = vsyncpa [#allocation6], 0
    %10 = vsyncpa [#allocation4], 0
    // Predicated region
    $region2: #{tpu_custom_call.1} parent=1 // pred_check
      _
    $region3: #{tpu_custom_call.1} parent=1 // pred_check_branch
      %12 = sbr.rel (0) target = $region5
    $region4: #{tpu_custom_call.1} parent=1 // pred_region
      %14 = vsyncadd [#allocation3], 0
      %s15 = sshll.u32 %s0, 4
      %s16 = int_to_ptr.hbm [resolvable:$true] %s15
      %s17 = sshll.u32 [#allocation2], 4
      %s18 = int_to_ptr.vmem [resolvable:$true] %s17
      %23 = dma.hbm_to_vmem [thread:$0]  %s16, 256, %s18, [#allocation3], 128, 128, 8
    $region5: #{tpu_custom_call.1} parent=1 // pred_fallthru
      _
    // Predicated region
    $region6: #{tpu_custom_call.1} parent=1 // pred_check
      _
    $region7: #{tpu_custom_call.1} parent=1 // pred_check_branch
      %25 = sbr.rel (0) target = $region9
    $region8: #{tpu_custom_call.1} parent=1 // pred_region
      %27 = vsyncadd [#allocation6], 0
      %s28 = sshll.u32 %s1, 4
      %s29 = int_to_ptr.hbm [resolvable:$true] %s28
      %s30 = sshll.u32 [#allocation5], 4
      %s31 = int_to_ptr.vmem [resolvable:$true] %s30
      %36 = dma.hbm_to_vmem [thread:$0]  %s29, 512, %s31, [#allocation6], 128, 128, 8
    $region9: #{tpu_custom_call.1} parent=1 // pred_fallthru
      _
    // Predicated region
    $region10: #{tpu_custom_call.1} parent=1 // pred_check
      _
    $region11: #{tpu_custom_call.1} parent=1 // pred_check_branch
      %38 = sbr.rel (0) target = $region13
    $region12: #{tpu_custom_call.1} parent=1 // pred_region
      _
    $region13: #{tpu_custom_call.1} parent=1 // pred_fallthru
      _
    // Predicated region
    $region14: #{tpu_custom_call.1} parent=1 // pred_check
      _
    $region15: #{tpu_custom_call.1} parent=1 // pred_check_branch
      %40 = sbr.rel (0) target = $region17
    $region16: #{tpu_custom_call.1} parent=1 // pred_region
      %42 = dma.done [#allocation3], 256
    $region17: #{tpu_custom_call.1} parent=1 // pred_fallthru
      _
    // Predicated region
    $region18: #{tpu_custom_call.1} parent=1 // pred_check
      _
    $region19: #{tpu_custom_call.1} parent=1 // pred_check_branch
      %44 = sbr.rel (0) target = $region21
    $region20: #{tpu_custom_call.1} parent=1 // pred_region
      %46 = dma.done [#allocation6], 512
    $region21: #{tpu_custom_call.1} parent=1 // pred_fallthru
      _
    %v47 = vld [vmem:[#allocation2] sm:$0xff]
    %v48 = vld [vmem:[#allocation2 + $0x8] sm:$0xff]
    %vm49 = vcmask 261120
    %v50 = vsel %vm49, %v47, 0.0
    %51 = vadd.xlane.f32.xlu0 %v50
    %v52 = vpop.xlane.xlu0 %51
    %v53 = vsel %vm49, %v48, 0.0
    %54 = vadd.xlane.f32.xlu0 %v53
    %v55 = vpop.xlane.xlu0 %54
    %v56 = vrcp.pop 32.0
    %v57 = vmul.f32 32.0, %v56
    %v58 = vsub.f32 1.0, %v57
    %v59 = vmul.f32 %v56, %v58
    %v60 = vadd.f32 %v56, %v59
    %vm61 = vweird.f32 %v56
    %v62 = vsel %vm61, %v56, %v60
    %v63 = vmul.f32 %v52, %v62
    %v64 = vmul.f32 %v55, %v62
    %v65 = vmul.f32 %v47, %v47
    %v66 = vmul.f32 %v48, %v48
    %v67 = vsel %vm49, %v65, 0.0
    %68 = vadd.xlane.f32.xlu0 %v67
    %v69 = vpop.xlane.xlu0 %68
    %v70 = vsel %vm49, %v66, 0.0
    %71 = vadd.xlane.f32.xlu0 %v70
    %v72 = vpop.xlane.xlu0 %71
    %v73 = vmul.f32 %v69, %v62
    %v74 = vmul.f32 %v72, %v62
    %v75 = vmul.f32 %v63, %v63
    %v76 = vmul.f32 %v64, %v64
    %v77 = vsub.f32 %v73, %v75
    %v78 = vsub.f32 %v74, %v76
    %v79 = vmax.f32 %v77, 0.0
    %v80 = vmax.f32 %v78, 0.0
    %v81 = vsub.f32 %v47, %v63
    %v82 = vsub.f32 %v48, %v64
    %v83 = vadd.f32 %v79, 1e-05
    %v84 = vadd.f32 %v80, 1e-05
    %v85 = vrsqrt.pop %v83
    %v86 = vmul.f32 %v85, %v83
    %v87 = vmul.f32 %v86, %v85
    %v88 = vmul.f32 0.5, %v87
    %v89 = vsub.f32 1.5, %v88
    %v90 = vmul.f32 %v85, %v89
    %vm91 = vweird.f32 %v83
    %vm92 = vweird.f32 %v85
    %vm93 = vmor %vm91, %vm92
    %v94 = vsel %vm93, %v85, %v90
    %v95 = vrsqrt.pop %v84
    %v96 = vmul.f32 %v95, %v84
    %v97 = vmul.f32 %v96, %v95
    %v98 = vmul.f32 0.5, %v97
    %v99 = vsub.f32 1.5, %v98
    %v100 = vmul.f32 %v95, %v99
    %vm101 = vweird.f32 %v84
    %vm102 = vweird.f32 %v95
    %vm103 = vmor %vm101, %vm102
    %v104 = vsel %vm103, %v95, %v100
    %v105 = vmul.f32 %v81, %v94
    %v106 = vmul.f32 %v82, %v104
    %v107 = vld [vmem:[#allocation5] sm:$0xff]
    %v108 = vld [vmem:[#allocation5 + $0x8] sm:$0xff]
    %v109 = vld [vmem:[#allocation5 + $0x10] sm:$0xff]
    %v110 = vld [vmem:[#allocation5 + $0x18] sm:$0xff]
    %v111 = vld [vmem:[%s2] sm:$0x1]
    %v113 = vperm.slane %v111, 0
    %v116 = vsel %vm49, %v105, 0
    %v119 = vsel %vm49, %v106, 0
    %121 = vmatpush.msra.mxu0 0.0
    %122 = vmatpush.msra.mxu0 0.0
    %123 = vmatpush.msra.mxu0 0.0
    %124 = vmatpush.msra.mxu0 0.0
    %125 = vmatpush.msra.mxu0 0.0
    %126 = vmatpush.msra.mxu0 0.0
    %127 = vmatpush.msra.mxu0 0.0
    %128 = vmatpush.msra.mxu0 0.0
    %129 = vmatpush.msra.mxu0 0.0
    %130 = vmatpush.msra.mxu0 0.0
    %131 = vmatpush.msra.mxu0 0.0
    %132 = vmatpush.msra.mxu0 0.0
    %133 = vmatpush.msra.mxu0 %v110
    %134 = vmatpush.msra.mxu0 %v109
    %135 = vmatpush.msra.mxu0 %v108
    %136 = vmatpush.msra.mxu0 %v107
    %137 = vmatmul.f32.gmra.mxu0 %v116
    %v138 = vpop.f32.mrf.mxu0
    %v139 = vadd.f32 %v113, %v138
    %140 = vmatmul.f32.gmra.mxu0 %v119
    %v141 = vpop.f32.mrf.mxu0
    %v142 = vadd.f32 %v113, %v141
    %143 = vdwg.mxu0
    %v144 = vpack.c.bf16 %v139, %v139
    %v145 = vpack.c.bf16 %v142, %v142
    %146 = vst [vmem:[#allocation7] sm:$0xf] %v144
    %147 = vst [vmem:[#allocation7 + $0x4] sm:$0xf] %v145
    // Predicated region
    $region22: #{tpu_custom_call.1} parent=1 // pred_check
      _
    $region23: #{tpu_custom_call.1} parent=1 // pred_check_branch
      %149 = sbr.rel (0) target = $region25
    $region24: #{tpu_custom_call.1} parent=1 // pred_region
      %151 = vsyncadd [#allocation4], 0
      %s152 = sshll.u32 [#allocation7], 4
      %s153 = int_to_ptr.vmem [resolvable:$true] %s152
      %s154 = sshll.u32 %s3, 4
      %s155 = int_to_ptr.hbm [resolvable:$true] %s154
      %160 = dma.vmem_to_hbm [thread:$0]  %s153, 128, %s155, [#allocation4], 64, 64, 4
    $region25: #{tpu_custom_call.1} parent=1 // pred_fallthru
      _
    // Predicated region
    $region26: #{tpu_custom_call.1} parent=1 // pred_check
      _
    $region27: #{tpu_custom_call.1} parent=1 // pred_check_branch
      %162 = sbr.rel (0) target = $region29
    $region28: #{tpu_custom_call.1} parent=1 // pred_region
      %164 = dma.done [#allocation4], 128
    $region29: #{tpu_custom_call.1} parent=1 // pred_fallthru
      _
    %165 = vsyncpa [#allocation3], 1
    %166 = vsyncpa [#allocation6], 1
    %167 = vsyncpa [#allocation4], 1

</llo_original>
